<compile_context>
chip_gen: v7x
topology: tpu7x:2x2x1
jax: 0.10.0
libtpu: 0.0.40
codegen_flags: <defaults>
</compile_context>

<pallas_src>
import numpy as np
import jax
import jax.numpy as jnp
from jax.experimental import pallas as pl
from jax.experimental.pallas import tpu as pltpu


# ----------------------------------------------------------------------------
# Pallas kernel: fused  W1^T @ x + b1 -> LeakyReLU -> W2^T @ h + b2 ->
# per-channel sigmoid / sigmoid-0.5 / identity (mask & shift vectors).
# Shapes inside the kernel (one grid step):
#   x_ref    : (in_dim,   TILE_HW)  bf16
#   w1t_ref  : (hidden_p, in_dim)   bf16   (resident)
#   b1_ref   : (hidden_p, 1)        f32    (resident)
#   w2t_ref  : (out_dim,  hidden_p) bf16   (resident)
#   b2_ref   : (out_dim,  1)        f32    (resident)
#   mask_ref : (out_dim,  1)        f32    (resident)
#   shift_ref: (out_dim,  1)        f32    (resident)
#   out_ref  : (out_dim,  TILE_HW)  f32
# ----------------------------------------------------------------------------
def _pred_kernel(x_ref, w1t_ref, b1_ref, w2t_ref, b2_ref, mask_ref, shift_ref,
                 out_ref):
    x = x_ref[...]                                           # (in_dim, T) bf16
    h = jnp.dot(w1t_ref[...], x,
                preferred_element_type=jnp.float32)          # (hidden_p, T) f32
    h = h + b1_ref[...]                                      # lane broadcast
    h = jnp.where(h > 0, h, 0.01 * h)                        # LeakyReLU(0.01)
    o = jnp.dot(w2t_ref[...], h.astype(jnp.bfloat16),
                preferred_element_type=jnp.float32)          # (out_dim, T) f32
    o = o + b2_ref[...]
    sig = jax.nn.sigmoid(o)
    # mask == 1 for conf channels (sigmoid) and tx/ty channels (sigmoid - 0.5);
    # shift == -0.5 only for tx/ty channels; everything else passes through.
    out_ref[...] = o + mask_ref[...] * (sig + shift_ref[...] - o)


def _choose_tile_hw(hw):
    # Lane tile must be a multiple of 128 or equal to the full spatial extent.
    if hw % 128 == 0:
        return min(hw, 512)          # >=512 rows ~ 85% of HBM roofline
    # TODO(synk): for very large HW not divisible by 128, pad HW host-side.
    return hw                        # e.g. 7x7 grid -> 49 (single lane block)


def _vmem_limit_bytes(in_dim, hidden_p, out_dim, tile_hw):
    x_tile = in_dim * tile_hw * 2                       # bf16, per buffer
    o_tile = out_dim * tile_hw * 4                      # f32,  per buffer
    weights = ((hidden_p * in_dim + out_dim * hidden_p) * 2
               + (hidden_p + 3 * out_dim) * 4)
    interm = hidden_p * tile_hw * (4 + 2) + out_dim * tile_hw * 4
    need = 2 * (x_tile + o_tile) + 2 * weights + interm
    # Floor at the 32 MiB scoped default, cap well under v7x's 64 MiB physical.
    return int(min(48 << 20, max(32 << 20, 2 * need)))


def _run_pred_kernel(x3d, w1t, b1, w2t, b2, mask, shift):
    """x3d: (B, in_dim, HW) bf16  ->  (B, out_dim, HW) f32."""
    B, in_dim, HW = x3d.shape
    hidden_p = w1t.shape[0]
    out_dim = w2t.shape[0]
    tile_hw = _choose_tile_hw(HW)
    grid = (B, pl.cdiv(HW, tile_hw))

    n_pix = B * HW
    cost = pl.CostEstimate(
        flops=2 * n_pix * (in_dim * hidden_p + hidden_p * out_dim),
        transcendentals=n_pix * out_dim,
        bytes_accessed=(n_pix * in_dim * 2 + n_pix * out_dim * 4
                        + (hidden_p * in_dim + out_dim * hidden_p) * 2
                        + (hidden_p + 3 * out_dim) * 4),
    )

    resident = lambda b, t: (0, 0)   # weights/bias/mask/shift stay in VMEM
    grid_spec = pltpu.PrefetchScalarGridSpec(
        num_scalar_prefetch=0,
        grid=grid,
        in_specs=[
            pl.BlockSpec((None, in_dim, tile_hw), lambda b, t: (b, 0, t)),
            pl.BlockSpec((hidden_p, in_dim), resident),
            pl.BlockSpec((hidden_p, 1), resident),
            pl.BlockSpec((out_dim, hidden_p), resident),
            pl.BlockSpec((out_dim, 1), resident),
            pl.BlockSpec((out_dim, 1), resident),
            pl.BlockSpec((out_dim, 1), resident),
        ],
        out_specs=pl.BlockSpec((None, out_dim, tile_hw), lambda b, t: (b, 0, t)),
    )

    return pl.pallas_call(
        _pred_kernel,
        out_shape=jax.ShapeDtypeStruct((B, out_dim, HW), jnp.float32),
        grid_spec=grid_spec,
        compiler_params=pltpu.CompilerParams(
            dimension_semantics=("parallel", "parallel"),
            vmem_limit_bytes=_vmem_limit_bytes(in_dim, hidden_p, out_dim,
                                               tile_hw)),
        cost_estimate=cost,
    )(x3d, w1t, b1, w2t, b2, mask, shift)


# ----------------------------------------------------------------------------
# Module-level wrapper (parameters + forward, matching the PyTorch semantics)
# ----------------------------------------------------------------------------
class PredictionNetworkYOLOPallas:
    def __init__(self, in_dim, hidden_dim=128, num_anchors=9, num_classes=20,
                 key=None):
        assert num_anchors != 0 and num_classes != 0
        self.A = num_anchors
        self.C = num_classes
        self.in_dim = in_dim
        out_dim = 5 * num_anchors + num_classes
        # Pad hidden up to a multiple of 128 so both matmuls use full MXU tiles.
        hidden_p = ((hidden_dim + 127) // 128) * 128
        self.hidden_p = hidden_p

        key = jax.random.PRNGKey(0) if key is None else key
        k1, k2, k3, k4 = jax.random.split(key, 4)
        # Deterministic synthetic init (1x1 conv weights, stored transposed for
        # the channel-major matmuls).  bf16 for the MXU inputs, f32 biases.
        w1 = (jax.random.normal(k1, (hidden_dim, in_dim), jnp.float32)
              * (1.0 / np.sqrt(in_dim)))
        b1 = jax.random.normal(k2, (hidden_dim, 1), jnp.float32) * 0.01
        w2 = (jax.random.normal(k3, (out_dim, hidden_dim), jnp.float32)
              * (1.0 / np.sqrt(hidden_dim)))
        self.w1t = (jnp.zeros((hidden_p, in_dim), jnp.bfloat16)
                    .at[:hidden_dim].set(w1.astype(jnp.bfloat16)))
        self.b1 = (jnp.zeros((hidden_p, 1), jnp.float32)
                   .at[:hidden_dim].set(b1))
        self.w2t = (jnp.zeros((out_dim, hidden_p), jnp.bfloat16)
                    .at[:, :hidden_dim].set(w2.astype(jnp.bfloat16)))
        self.b2 = jax.random.normal(k4, (out_dim, 1), jnp.float32) * 0.01

        # Per-output-channel activation selector (channel-major column vecs).
        ch = np.arange(out_dim)
        is_conf = (ch < 5 * num_anchors) & (ch % 5 == 0)
        is_txty = (ch < 5 * num_anchors) & ((ch % 5 == 1) | (ch % 5 == 2))
        self.mask = jnp.asarray((is_conf | is_txty)[:, None].astype(np.float32))
        self.shift = jnp.asarray(np.where(is_txty, -0.5, 0.0)[:, None]
                                 .astype(np.float32))

    def forward(self, features, pos_anc_idx=None, neg_anc_idx=None):
        # features: (B, in_dim, H, W)  -- NCHW like the PyTorch module.
        B, in_dim, H, W = features.shape
        A, C = self.A, self.C
        HW = H * W

        # Free reshape (no transpose); cast activations to bf16 for the MXU.
        x3d = features.astype(jnp.bfloat16).reshape(B, in_dim, HW)

        out3d = _run_pred_kernel(x3d, self.w1t, self.b1, self.w2t, self.b2,
                                 self.mask, self.shift)    # (B, 5A+C, HW)
        out = out3d.reshape(B, 5 * A + C, H, W)            # free reshape (NCHW)

        conf_scores = out[:, 0:5 * A:5, :, :]                       # (B,A,H,W)
        offsets = out[:, 0:5 * A, :, :].reshape(B, A, 5, H, W)[:, :, 1:5, :, :]
        cls_scores = out[:, 5 * A:, :, :]                           # (B,C,H,W)

        if pos_anc_idx is not None and neg_anc_idx is not None:
            # conf: flatten (B,A,H,W) -> [pos; neg]
            conf_flat = conf_scores.reshape(-1)
            pos_neg = jnp.concatenate([pos_anc_idx, neg_anc_idx])
            conf_scores = conf_flat[pos_neg]                        # (2M,)
            # offsets: (B,A,4,H,W) -> (B,A,H,W,4) -> (-1,4) -> gather pos
            off_flat = jnp.transpose(offsets, (0, 1, 3, 4, 2)).reshape(-1, 4)
            offsets = off_flat[pos_anc_idx]                         # (M,4)
            # cls: (B,C,H,W) -> (B,H,W,C) -> expand anchors -> (-1,C) -> gather
            cls_p = jnp.transpose(cls_scores, (0, 2, 3, 1))         # (B,H,W,C)
            cls_e = jnp.broadcast_to(cls_p[:, None], (B, A, H, W, C))
            cls_scores = cls_e.reshape(-1, C)[pos_anc_idx]          # (M,C)

        return conf_scores, offsets, cls_scores


# ----------------------------------------------------------------------------
# Pure-JAX reference of the hot path (same bf16/f32 mixed precision) for check
# ----------------------------------------------------------------------------
def _reference_out(features, net):
    B, in_dim, H, W = features.shape
    x = features.astype(jnp.bfloat16).reshape(B, in_dim, H * W)
    outs = []
    for b in range(B):
        h = jnp.dot(net.w1t, x[b], preferred_element_type=jnp.float32) + net.b1
        h = jnp.where(h > 0, h, 0.01 * h)
        o = (jnp.dot(net.w2t, h.astype(jnp.bfloat16),
                     preferred_element_type=jnp.float32) + net.b2)
        o = o + net.mask * (jax.nn.sigmoid(o) + net.shift - o)
        outs.append(o)
    return jnp.stack(outs, axis=0)                        # (B, out_dim, HW)


if __name__ == "__main__":
    # Small shapes consistent with the module: 7x7 anchor grid.
    B, in_dim, H, W = 2, 16, 7, 7
    hidden_dim, A, C = 32, 9, 20
    M = 6

    key = jax.random.PRNGKey(0)
    kf, kp, kn, kw = jax.random.split(key, 4)
    features = jax.random.normal(kf, (B, in_dim, H, W), jnp.float32)
    total_anchors = B * A * H * W
    pos_anc_idx = jax.random.randint(kp, (M,), 0, total_anchors, jnp.int32)
    neg_anc_idx = jax.random.randint(kn, (M,), 0, total_anchors, jnp.int32)

    net = PredictionNetworkYOLOPallas(in_dim, hidden_dim, A, C, key=kw)

    # Inference path
    conf_i, off_i, cls_i = net.forward(features)
    jax.block_until_ready((conf_i, off_i, cls_i))
    assert conf_i.shape == (B, A, H, W)
    assert off_i.shape == (B, A, 4, H, W)
    assert cls_i.shape == (B, C, H, W)

    # Training path (anchor extraction)
    conf_t, off_t, cls_t = net.forward(features, pos_anc_idx, neg_anc_idx)
    jax.block_until_ready((conf_t, off_t, cls_t))
    assert conf_t.shape == (2 * M,)
    assert off_t.shape == (M, 4)
    assert cls_t.shape == (M, C)

    # Correctness check of the Pallas-computed hot path against pure JAX
    # (same bf16 matmul inputs / f32 accumulation & elementwise math).
    ref = _reference_out(features, net)
    got = _run_pred_kernel(
        features.astype(jnp.bfloat16).reshape(B, in_dim, H * W),
        net.w1t, net.b1, net.w2t, net.b2, net.mask, net.shift)
    np.testing.assert_allclose(np.asarray(got), np.asarray(ref),
                               rtol=2e-3, atol=2e-3)

    print("KERNEL_OK")
</pallas_src>

<mosaic_0001>
module attributes {stable_mosaic.version = 11 : i64} {
  func.func @_pred_kernel(%arg0: i32, %arg1: i32, %arg2: memref<1x16x49xbf16, #tpu.memory_space<vmem>>, %arg3: memref<128x16xbf16, #tpu.memory_space<vmem>>, %arg4: memref<128x1xf32, #tpu.memory_space<vmem>>, %arg5: memref<65x128xbf16, #tpu.memory_space<vmem>>, %arg6: memref<65x1xf32, #tpu.memory_space<vmem>>, %arg7: memref<65x1xf32, #tpu.memory_space<vmem>>, %arg8: memref<65x1xf32, #tpu.memory_space<vmem>>, %arg9: memref<1x65x49xf32, #tpu.memory_space<vmem>>) attributes {dimension_semantics = [#tpu.dimension_semantics<parallel>, #tpu.dimension_semantics<parallel>], iteration_bounds = array<i64: 2, 1>, scalar_prefetch = 0 : i64, scratch_operands = 0 : i64, tpu.core_type = #tpu.core_type<tc>, window_params = [{transform_indices = @transform_0, window_bounds = array<i64: 1, 16, 49>}, {pipeline_mode = #tpu.pipeline_mode<synchronous>, transform_indices = @transform_1, window_bounds = array<i64: 128, 16>}, {pipeline_mode = #tpu.pipeline_mode<synchronous>, transform_indices = @transform_2, window_bounds = array<i64: 128, 1>}, {pipeline_mode = #tpu.pipeline_mode<synchronous>, transform_indices = @transform_3, window_bounds = array<i64: 65, 128>}, {pipeline_mode = #tpu.pipeline_mode<synchronous>, transform_indices = @transform_4, window_bounds = array<i64: 65, 1>}, {pipeline_mode = #tpu.pipeline_mode<synchronous>, transform_indices = @transform_5, window_bounds = array<i64: 65, 1>}, {pipeline_mode = #tpu.pipeline_mode<synchronous>, transform_indices = @transform_6, window_bounds = array<i64: 65, 1>}, {transform_indices = @transform_7, window_bounds = array<i64: 1, 65, 49>}]} {
    %c0 = arith.constant 0 : index
    %c0_0 = arith.constant 0 : index
    %c0_1 = arith.constant 0 : index
    %0 = vector.load %arg2[%c0, %c0_0, %c0_1] : memref<1x16x49xbf16, #tpu.memory_space<vmem>>, vector<1x16x49xbf16>
    %1 = vector.shape_cast %0 : vector<1x16x49xbf16> to vector<16x49xbf16>
    %c0_2 = arith.constant 0 : index
    %c0_3 = arith.constant 0 : index
    %2 = vector.load %arg3[%c0_2, %c0_3] : memref<128x16xbf16, #tpu.memory_space<vmem>>, vector<128x16xbf16>
    %cst = arith.constant dense<0.000000e+00> : vector<128x49xf32>
    %3 = tpu.matmul %2, %1, %cst {dimension_numbers = #tpu.dot_dimension_numbers<[1], [0], [0], [1], [0, 0, 1, 1], [], []>} : vector<128x16xbf16>, vector<16x49xbf16>, vector<128x49xf32> -> vector<128x49xf32>
    %c0_4 = arith.constant 0 : index
    %c0_5 = arith.constant 0 : index
    %4 = vector.load %arg4[%c0_4, %c0_5] : memref<128x1xf32, #tpu.memory_space<vmem>>, vector<128x1xf32>
    %5 = vector.broadcast %4 : vector<128x1xf32> to vector<128x49xf32>
    %6 = arith.addf %3, %5 : vector<128x49xf32>
    %cst_6 = arith.constant 0.000000e+00 : f32
    %7 = vector.broadcast %cst_6 : f32 to vector<128x49xf32>
    %8 = arith.cmpf ogt, %6, %7 : vector<128x49xf32>
    %cst_7 = arith.constant 0.00999999977 : f32
    %9 = vector.broadcast %cst_7 : f32 to vector<128x49xf32>
    %10 = arith.mulf %9, %6 : vector<128x49xf32>
    %11 = arith.select %8, %6, %10 : vector<128x49xi1>, vector<128x49xf32>
    %c0_8 = arith.constant 0 : index
    %c0_9 = arith.constant 0 : index
    %12 = vector.load %arg5[%c0_8, %c0_9] : memref<65x128xbf16, #tpu.memory_space<vmem>>, vector<65x128xbf16>
    %13 = arith.truncf %11 : vector<128x49xf32> to vector<128x49xbf16>
    %cst_10 = arith.constant dense<0.000000e+00> : vector<65x49xf32>
    %14 = tpu.matmul %12, %13, %cst_10 {dimension_numbers = #tpu.dot_dimension_numbers<[1], [0], [0], [1], [0, 0, 1, 1], [], []>} : vector<65x128xbf16>, vector<128x49xbf16>, vector<65x49xf32> -> vector<65x49xf32>
    %c0_11 = arith.constant 0 : index
    %c0_12 = arith.constant 0 : index
    %15 = vector.load %arg6[%c0_11, %c0_12] : memref<65x1xf32, #tpu.memory_space<vmem>>, vector<65x1xf32>
    %16 = vector.broadcast %15 : vector<65x1xf32> to vector<65x49xf32>
    %17 = arith.addf %14, %16 : vector<65x49xf32>
    %18 = arith.negf %17 : vector<65x49xf32>
    %19 = math.exp %18 : vector<65x49xf32>
    %cst_13 = arith.constant 1.000000e+00 : f32
    %20 = vector.broadcast %cst_13 : f32 to vector<65x49xf32>
    %21 = arith.addf %20, %19 : vector<65x49xf32>
    %22 = arith.divf %20, %21 : vector<65x49xf32>
    %c0_14 = arith.constant 0 : index
    %c0_15 = arith.constant 0 : index
    %23 = vector.load %arg7[%c0_14, %c0_15] : memref<65x1xf32, #tpu.memory_space<vmem>>, vector<65x1xf32>
    %c0_16 = arith.constant 0 : index
    %c0_17 = arith.constant 0 : index
    %24 = vector.load %arg8[%c0_16, %c0_17] : memref<65x1xf32, #tpu.memory_space<vmem>>, vector<65x1xf32>
    %25 = vector.broadcast %24 : vector<65x1xf32> to vector<65x49xf32>
    %26 = arith.addf %22, %25 : vector<65x49xf32>
    %27 = arith.subf %26, %17 : vector<65x49xf32>
    %28 = vector.broadcast %23 : vector<65x1xf32> to vector<65x49xf32>
    %29 = arith.mulf %28, %27 : vector<65x49xf32>
    %30 = arith.addf %17, %29 : vector<65x49xf32>
    %c0_18 = arith.constant 0 : index
    %c0_19 = arith.constant 0 : index
    %c0_20 = arith.constant 0 : index
    %31 = vector.load %arg9[%c0_18, %c0_19, %c0_20] : memref<1x65x49xf32, #tpu.memory_space<vmem>>, vector<1x65x49xf32>
    %32 = vector.shape_cast %31 : vector<1x65x49xf32> to vector<65x49xf32>
    %33 = vector.shape_cast %30 : vector<65x49xf32> to vector<1x65x49xf32>
    tpu.vector_store %arg9[%c0_18, %c0_19, %c0_20], %33 {strides = array<i32>} : memref<1x65x49xf32, #tpu.memory_space<vmem>>, vector<1x65x49xf32>,
    return
  }
  func.func @transform_0(%arg0: i32, %arg1: i32) -> (i32, i32, i32) {
    %c0_i32 = arith.constant 0 : i32
    %c0_i32_0 = arith.constant 0 : i32
    return %arg0, %c0_i32, %arg1 : i32, i32, i32
  }
  func.func @transform_1(%arg0: i32, %arg1: i32) -> (i32, i32) {
    %c0_i32 = arith.constant 0 : i32
    %c0_i32_0 = arith.constant 0 : i32
    %c0_i32_1 = arith.constant 0 : i32
    return %c0_i32, %c0_i32_0 : i32, i32
  }
  func.func @transform_2(%arg0: i32, %arg1: i32) -> (i32, i32) {
    %c0_i32 = arith.constant 0 : i32
    %c0_i32_0 = arith.constant 0 : i32
    %c0_i32_1 = arith.constant 0 : i32
    return %c0_i32, %c0_i32_0 : i32, i32
  }
  func.func @transform_3(%arg0: i32, %arg1: i32) -> (i32, i32) {
    %c0_i32 = arith.constant 0 : i32
    %c0_i32_0 = arith.constant 0 : i32
    %c0_i32_1 = arith.constant 0 : i32
    return %c0_i32, %c0_i32_0 : i32, i32
  }
  func.func @transform_4(%arg0: i32, %arg1: i32) -> (i32, i32) {
    %c0_i32 = arith.constant 0 : i32
    %c0_i32_0 = arith.constant 0 : i32
    %c0_i32_1 = arith.constant 0 : i32
    return %c0_i32, %c0_i32_0 : i32, i32
  }
  func.func @transform_5(%arg0: i32, %arg1: i32) -> (i32, i32) {
    %c0_i32 = arith.constant 0 : i32
    %c0_i32_0 = arith.constant 0 : i32
    %c0_i32_1 = arith.constant 0 : i32
    return %c0_i32, %c0_i32_0 : i32, i32
  }
  func.func @transform_6(%arg0: i32, %arg1: i32) -> (i32, i32) {
    %c0_i32 = arith.constant 0 : i32
    %c0_i32_0 = arith.constant 0 : i32
    %c0_i32_1 = arith.constant 0 : i32
    return %c0_i32, %c0_i32_0 : i32, i32
  }
  func.func @transform_7(%arg0: i32, %arg1: i32) -> (i32, i32, i32) {
    %c0_i32 = arith.constant 0 : i32
    %c0_i32_0 = arith.constant 0 : i32
    return %arg0, %c0_i32, %arg1 : i32, i32, i32
  }
}

</mosaic_0001>

<llo_original>
// kernel: tpu_custom_call.1
$region0: #{tpu_custom_call.1}
  #allocation0 [shape = 'u32[]', space=smem, size = 0x4, offset = 0x4, fixed_abs, tag = 'smem constant byte address 0x4 - core index']
  #allocation1 [shape = 'u32[144,128]{1,0:T(1,128)}', space=vmem, size = 0x12000, scoped, tag = 'internal scratch']
  %s0 = inlined_call_operand.vmem [shape: bf16[2,16,49], index: 0, kind: input, shape index: {}]
  %s1 = inlined_call_operand.vmem [shape: bf16[128,16], index: 1, kind: input, shape index: {}]
  %s2 = inlined_call_operand.vmem [shape: f32[128,1], index: 2, kind: input, shape index: {}]
  %s3 = inlined_call_operand.vmem [shape: bf16[65,128], index: 3, kind: input, shape index: {}]
  %s4 = inlined_call_operand.vmem [shape: f32[65,1], index: 4, kind: input, shape index: {}]
  %s5 = inlined_call_operand.vmem [shape: f32[65,1], index: 5, kind: input, shape index: {}]
  %s6 = inlined_call_operand.vmem [shape: f32[65,1], index: 6, kind: input, shape index: {}]
  %s7 = inlined_call_operand.vmem [shape: f32[2,65,49], index: 7, kind: output, shape index: {}]
  %s8 = sld [smem:[#allocation0]]
  $region61: #{tpu_custom_call.1} parent=0
    _
  %s10 = ssub.s32 1, %s8
  %s11 = scalar_select 0, %s10, %s8
  loop: start=0, step=1, limit=4
  $region2: #{tpu_custom_call.1} parent=0 // loop_pre_header
    _
  $region3: #{tpu_custom_call.1} parent=0 // loop_header
    %s13 = sphi 0, %s17
    %p14 = scmp.ge.s32.totalorder %s13, 4
    %s20 = sphi 0, %s32
    %s21 = sphi 0, %s28
    %s22 = sphi 0, %s20
    %s23 = sphi 0, %s21
    %s24 = sphi 0, %s22
    %s25 = sphi 0, %s23
    %s37 = sphi 0, %s39
    %s40 = sphi 0, %s37
    %s41 = sphi 0, %s40
    %s57 = sphi 0, %s41
    %s61 = sphi 0, %s61
    %s63 = sphi 0, %s61
    %s64 = sphi 0, %s63
    %s78 = sphi 0, %s64
    %s82 = sphi 0, %s82
    %s84 = sphi 0, %s82
    %s85 = sphi 0, %s84
    %s99 = sphi 0, %s85
    %s103 = sphi 0, %s103
    %s105 = sphi 0, %s103
    %s106 = sphi 0, %s105
    %s120 = sphi 0, %s106
    %s124 = sphi 0, %s124
    %s126 = sphi 0, %s124
    %s127 = sphi 0, %s126
    %s141 = sphi 0, %s127
    %s145 = sphi 0, %s145
    %s147 = sphi 0, %s145
    %s148 = sphi 0, %s147
    %s162 = sphi 0, %s148
    %s166 = sphi 0, %s166
    %s168 = sphi 0, %s166
    %s169 = sphi 0, %s168
    %s183 = sphi 0, %s169
    %s191 = sphi 0, %s193
    %s194 = sphi 0, %s191
    %s195 = sphi 0, %s194
    %s211 = sphi 0, %s195
  $region4: #{tpu_custom_call.1} parent=0 // loop_header_branch
    %16 = sbr.rel (%p14) target = $region8
  $region5: #{tpu_custom_call.1} parent=0 // loop_body
    %s18 = ssub.s32 %s13, 1
    %s19 = ssub.s32 %s13, 2
    %s26 = sadd.s32 1, %s21
    %p27 = scmp.ge.s32.totalorder %s26, 1
    %s28 = scalar_select %p27, 0, %s26
    %s29 = sadd.s32 1, %s20
    %s30 = scalar_select %p27, %s29, %s20
    %p31 = scmp.ge.s32.totalorder %s30, 2
    %s32 = scalar_select %p31, 0, %s30
    %s33 = ssub.s32 %s20, %s32
    %s34 = ssub.s32 %s21, %s28
    %s35 = sor.u32 %s33, %s34
    %p36 = scmp.eq.s32.totalorder %s35, 0
    %s38 = sadd.s32 %s37, 1
    %s39 = scalar_select %p36, %s37, %s38
    %p42 = pneg %p36
    %p43 = scmp.eq.s32.totalorder %s13, 1
    %p44 = por %p42, %p43
    %p45 = scmp.ne.s32.totalorder %s37, %s40
    %p46 = scmp.eq.s32.totalorder %s13, 0
    %p47 = por %p45, %p46
    %p48 = scmp.ne.s32.totalorder %s37, %s40
    %p49 = scmp.eq.s32.totalorder %s18, 1
    %p50 = por %p48, %p49
    %p51 = scmp.ne.s32.totalorder %s40, %s41
    %p52 = scmp.eq.s32.totalorder %s18, 0
    %p53 = por %p51, %p52
    %p54 = scmp.ne.s32.totalorder %s40, %s41
    %p55 = scmp.eq.s32.totalorder %s19, 1
    %p56 = por %p54, %p55
    %p58 = scmp.ne.s32.totalorder %s41, %s57
    %p59 = scmp.eq.s32.totalorder %s19, 0
    %p60 = por %p58, %p59
    %s62 = sadd.s32 %s61, 1
    %p65 = scmp.eq.s32.totalorder %s13, 1
    %p66 = scmp.ne.s32.totalorder %s61, %s63
    %p67 = scmp.eq.s32.totalorder %s13, 0
    %p68 = por %p66, %p67
    %p69 = scmp.ne.s32.totalorder %s61, %s63
    %p70 = scmp.eq.s32.totalorder %s18, 1
    %p71 = por %p69, %p70
    %p72 = scmp.ne.s32.totalorder %s63, %s64
    %p73 = scmp.eq.s32.totalorder %s18, 0
    %p74 = por %p72, %p73
    %p75 = scmp.ne.s32.totalorder %s63, %s64
    %p76 = scmp.eq.s32.totalorder %s19, 1
    %p77 = por %p75, %p76
    %p79 = scmp.ne.s32.totalorder %s64, %s78
    %p80 = scmp.eq.s32.totalorder %s19, 0
    %p81 = por %p79, %p80
    %s83 = sadd.s32 %s82, 1
    %p86 = scmp.eq.s32.totalorder %s13, 1
    %p87 = scmp.ne.s32.totalorder %s82, %s84
    %p88 = scmp.eq.s32.totalorder %s13, 0
    %p89 = por %p87, %p88
    %p90 = scmp.ne.s32.totalorder %s82, %s84
    %p91 = scmp.eq.s32.totalorder %s18, 1
    %p92 = por %p90, %p91
    %p93 = scmp.ne.s32.totalorder %s84, %s85
    %p94 = scmp.eq.s32.totalorder %s18, 0
    %p95 = por %p93, %p94
    %p96 = scmp.ne.s32.totalorder %s84, %s85
    %p97 = scmp.eq.s32.totalorder %s19, 1
    %p98 = por %p96, %p97
    %p100 = scmp.ne.s32.totalorder %s85, %s99
    %p101 = scmp.eq.s32.totalorder %s19, 0
    %p102 = por %p100, %p101
    %s104 = sadd.s32 %s103, 1
    %p107 = scmp.eq.s32.totalorder %s13, 1
    %p108 = scmp.ne.s32.totalorder %s103, %s105
    %p109 = scmp.eq.s32.totalorder %s13, 0
    %p110 = por %p108, %p109
    %p111 = scmp.ne.s32.totalorder %s103, %s105
    %p112 = scmp.eq.s32.totalorder %s18, 1
    %p113 = por %p111, %p112
    %p114 = scmp.ne.s32.totalorder %s105, %s106
    %p115 = scmp.eq.s32.totalorder %s18, 0
    %p116 = por %p114, %p115
    %p117 = scmp.ne.s32.totalorder %s105, %s106
    %p118 = scmp.eq.s32.totalorder %s19, 1
    %p119 = por %p117, %p118
    %p121 = scmp.ne.s32.totalorder %s106, %s120
    %p122 = scmp.eq.s32.totalorder %s19, 0
    %p123 = por %p121, %p122
    %s125 = sadd.s32 %s124, 1
    %p128 = scmp.eq.s32.totalorder %s13, 1
    %p129 = scmp.ne.s32.totalorder %s124, %s126
    %p130 = scmp.eq.s32.totalorder %s13, 0
    %p131 = por %p129, %p130
    %p132 = scmp.ne.s32.totalorder %s124, %s126
    %p133 = scmp.eq.s32.totalorder %s18, 1
    %p134 = por %p132, %p133
    %p135 = scmp.ne.s32.totalorder %s126, %s127
    %p136 = scmp.eq.s32.totalorder %s18, 0
    %p137 = por %p135, %p136
    %p138 = scmp.ne.s32.totalorder %s126, %s127
    %p139 = scmp.eq.s32.totalorder %s19, 1
    %p140 = por %p138, %p139
    %p142 = scmp.ne.s32.totalorder %s127, %s141
    %p143 = scmp.eq.s32.totalorder %s19, 0
    %p144 = por %p142, %p143
    %s146 = sadd.s32 %s145, 1
    %p149 = scmp.eq.s32.totalorder %s13, 1
    %p150 = scmp.ne.s32.totalorder %s145, %s147
    %p151 = scmp.eq.s32.totalorder %s13, 0
    %p152 = por %p150, %p151
    %p153 = scmp.ne.s32.totalorder %s145, %s147
    %p154 = scmp.eq.s32.totalorder %s18, 1
    %p155 = por %p153, %p154
    %p156 = scmp.ne.s32.totalorder %s147, %s148
    %p157 = scmp.eq.s32.totalorder %s18, 0
    %p158 = por %p156, %p157
    %p159 = scmp.ne.s32.totalorder %s147, %s148
    %p160 = scmp.eq.s32.totalorder %s19, 1
    %p161 = por %p159, %p160
    %p163 = scmp.ne.s32.totalorder %s148, %s162
    %p164 = scmp.eq.s32.totalorder %s19, 0
    %p165 = por %p163, %p164
    %s167 = sadd.s32 %s166, 1
    %p170 = scmp.eq.s32.totalorder %s13, 1
    %p171 = scmp.ne.s32.totalorder %s166, %s168
    %p172 = scmp.eq.s32.totalorder %s13, 0
    %p173 = por %p171, %p172
    %p174 = scmp.ne.s32.totalorder %s166, %s168
    %p175 = scmp.eq.s32.totalorder %s18, 1
    %p176 = por %p174, %p175
    %p177 = scmp.ne.s32.totalorder %s168, %s169
    %p178 = scmp.eq.s32.totalorder %s18, 0
    %p179 = por %p177, %p178
    %p180 = scmp.ne.s32.totalorder %s168, %s169
    %p181 = scmp.eq.s32.totalorder %s19, 1
    %p182 = por %p180, %p181
    %p184 = scmp.ne.s32.totalorder %s169, %s183
    %p185 = scmp.eq.s32.totalorder %s19, 0
    %p186 = por %p184, %p185
    %s187 = ssub.s32 %s20, %s32
    %s188 = ssub.s32 %s21, %s28
    %s189 = sor.u32 %s187, %s188
    %p190 = scmp.eq.s32.totalorder %s189, 0
    %s192 = sadd.s32 %s191, 1
    %s193 = scalar_select %p190, %s191, %s192
    %p196 = pneg %p190
    %p197 = scmp.eq.s32.totalorder %s13, 1
    %p198 = por %p196, %p197
    %p199 = scmp.ne.s32.totalorder %s191, %s194
    %p200 = scmp.eq.s32.totalorder %s13, 0
    %p201 = por %p199, %p200
    %p202 = scmp.ne.s32.totalorder %s191, %s194
    %p203 = scmp.eq.s32.totalorder %s18, 1
    %p204 = por %p202, %p203
    %p205 = scmp.ne.s32.totalorder %s194, %s195
    %p206 = scmp.eq.s32.totalorder %s18, 0
    %p207 = por %p205, %p206
    %p208 = scmp.ne.s32.totalorder %s194, %s195
    %p209 = scmp.eq.s32.totalorder %s19, 1
    %p210 = por %p208, %p209
    %p212 = scmp.ne.s32.totalorder %s195, %s211
    %p213 = scmp.eq.s32.totalorder %s19, 0
    %p214 = por %p212, %p213
    %p215 = scmp.le.s32.totalorder 1, %s13
    %p216 = scmp.lt.s32.totalorder %s13, 3
    %p217 = pnand %p215, %p216
    %p218 = pneg %p217
    // Predicated region
    $region9: #{tpu_custom_call.1} parent=5 // pred_check
      _
    $region10: #{tpu_custom_call.1} parent=5 // pred_check_branch
      %220 = sbr.rel (%p217) target = $region12
    $region11: #{tpu_custom_call.1} parent=5 // pred_region
      %s221 = ssub.s32 %s13, 1
      // Predicated region
      $region13: #{tpu_custom_call.1} parent=11 // pred_check
        %p222 = pneg %p74
      $region14: #{tpu_custom_call.1} parent=11 // pred_check_branch
        %224 = sbr.rel (%p222) target = $region16
      $region15: #{tpu_custom_call.1} parent=11 // pred_region
        _
      $region16: #{tpu_custom_call.1} parent=11 // pred_fallthru
        _
      // Predicated region
      $region17: #{tpu_custom_call.1} parent=11 // pred_check
        %p225 = pneg %p95
      $region18: #{tpu_custom_call.1} parent=11 // pred_check_branch
        %227 = sbr.rel (%p225) target = $region20
      $region19: #{tpu_custom_call.1} parent=11 // pred_region
        _
      $region20: #{tpu_custom_call.1} parent=11 // pred_fallthru
        _
      // Predicated region
      $region21: #{tpu_custom_call.1} parent=11 // pred_check
        %p228 = pneg %p116
      $region22: #{tpu_custom_call.1} parent=11 // pred_check_branch
        %230 = sbr.rel (%p228) target = $region24
      $region23: #{tpu_custom_call.1} parent=11 // pred_region
        _
      $region24: #{tpu_custom_call.1} parent=11 // pred_fallthru
        _
      // Predicated region
      $region25: #{tpu_custom_call.1} parent=11 // pred_check
        %p231 = pneg %p137
      $region26: #{tpu_custom_call.1} parent=11 // pred_check_branch
        %233 = sbr.rel (%p231) target = $region28
      $region27: #{tpu_custom_call.1} parent=11 // pred_region
        _
      $region28: #{tpu_custom_call.1} parent=11 // pred_fallthru
        _
      // Predicated region
      $region29: #{tpu_custom_call.1} parent=11 // pred_check
        %p234 = pneg %p158
      $region30: #{tpu_custom_call.1} parent=11 // pred_check_branch
        %236 = sbr.rel (%p234) target = $region32
      $region31: #{tpu_custom_call.1} parent=11 // pred_region
        _
      $region32: #{tpu_custom_call.1} parent=11 // pred_fallthru
        _
      // Predicated region
      $region33: #{tpu_custom_call.1} parent=11 // pred_check
        %p237 = pneg %p179
      $region34: #{tpu_custom_call.1} parent=11 // pred_check_branch
        %239 = sbr.rel (%p237) target = $region36
      $region35: #{tpu_custom_call.1} parent=11 // pred_region
        _
      $region36: #{tpu_custom_call.1} parent=11 // pred_fallthru
        _
    $region12: #{tpu_custom_call.1} parent=5 // pred_fallthru
      _
    %p240 = scmp.lt.s32.totalorder %s13, 2
    // Predicated region
    $region37: #{tpu_custom_call.1} parent=5 // pred_check
      %p241 = pneg %p240
    $region38: #{tpu_custom_call.1} parent=5 // pred_check_branch
      %243 = sbr.rel (%p241) target = $region40
    $region39: #{tpu_custom_call.1} parent=5 // pred_region
      // Predicated region
      $region41: #{tpu_custom_call.1} parent=39 // pred_check
        %p244 = pneg %p47
      $region42: #{tpu_custom_call.1} parent=39 // pred_check_branch
        %246 = sbr.rel (%p244) target = $region44
      $region43: #{tpu_custom_call.1} parent=39 // pred_region
        %p247 = scmp.lt.s32.totalorder %s20, 1
        %s248 = scalar_select %p247, %s20, 1
        %p249 = scmp.lt.s32.totalorder %s21, 0
        %s250 = scalar_select %p249, %s21, 0
        %s251 = smul.addr %s248, 2
        %s252 = sadd.s32 %s250, %s251
        %s253 = smul.addr %s252, 4
        %s254 = scalar_lea.vmem %s0, %s253
      $region44: #{tpu_custom_call.1} parent=39 // pred_fallthru
        _
    $region40: #{tpu_custom_call.1} parent=5 // pred_fallthru
      _
    %p255 = scmp.le.s32.totalorder 1, %s13
    %p256 = scmp.lt.s32.totalorder %s13, 3
    %p257 = pnand %p255, %p256
    %p258 = pneg %p257
    // Predicated region
    $region45: #{tpu_custom_call.1} parent=5 // pred_check
      _
    $region46: #{tpu_custom_call.1} parent=5 // pred_check_branch
      %260 = sbr.rel (%p257) target = $region48
    $region47: #{tpu_custom_call.1} parent=5 // pred_region
      %s261 = ssub.s32 %s13, 1
      %p262 = scmp.lt.s32.totalorder %s22, 1
      %s263 = scalar_select %p262, %s22, 1
      %p264 = scmp.lt.s32.totalorder %s23, 0
      %s265 = scalar_select %p264, %s23, 0
      %s266 = smul.addr %s263, 2
      %s267 = sadd.s32 %s265, %s266
      %s268 = smul.addr %s267, 4
      %s269 = scalar_lea.vmem %s0, %s268
      %p270 = pneg %p53
      %p271 = pneg %p50
      %p272 = pneg %p74
      %p273 = pneg %p71
      %p274 = pneg %p95
      %p275 = pneg %p92
      %p276 = pneg %p116
      %p277 = pneg %p113
      %p278 = pneg %p137
      %p279 = pneg %p134
      %p280 = pneg %p158
      %p281 = pneg %p155
      %p282 = pneg %p179
      %p283 = pneg %p176
      %p284 = pneg %p207
      %p285 = pneg %p204
      %p286 = scmp.lt.s32.totalorder %s22, 1
      %s287 = scalar_select %p286, %s22, 1
      %p288 = scmp.lt.s32.totalorder %s23, 0
      %s289 = scalar_select %p288, %s23, 0
      %s290 = smul.addr %s287, 9
      %s291 = sadd.s32 %s289, %s290
      %s292 = smul.addr %s291, 8
      %s293 = scalar_lea.vmem %s7, %s292
      %p294 = scmp.lt.s32.totalorder %s22, 1
      %s295 = scalar_select %p294, %s22, 1
      %p296 = scmp.lt.s32.totalorder %s23, 0
      %s297 = scalar_select %p296, %s23, 0
      %s298 = smul.addr %s295, 2
      %s299 = sadd.s32 %s297, %s298
      %s300 = smul.addr %s299, 4
      %s301 = scalar_lea.vmem %s0, %s300
      %p302 = scmp.lt.s32.totalorder %s22, 1
      %s303 = scalar_select %p302, %s22, 1
      %p304 = scmp.lt.s32.totalorder %s23, 0
      %s305 = scalar_select %p304, %s23, 0
      %s306 = smul.addr %s303, 9
      %s307 = sadd.s32 %s305, %s306
      %s308 = smul.addr %s307, 8
      %s309 = scalar_lea.vmem %s7, %s308
      %v311 = vld [vmem:[%s301] sm:$0xf]
      %v312 = vld [vmem:[%s301 + $0x4] sm:$0xf]
      %v313 = vld [vmem:[%s1] sm:$0xf]
      %v314 = vld [vmem:[%s1 + $0x4] sm:$0xf]
      %v315 = vld [vmem:[%s1 + $0x8] sm:$0xf]
      %v316 = vld [vmem:[%s1 + $0xc] sm:$0xf]
      %v317 = vld [vmem:[%s1 + $0x10] sm:$0xf]
      %v318 = vld [vmem:[%s1 + $0x14] sm:$0xf]
      %v319 = vld [vmem:[%s1 + $0x18] sm:$0xf]
      %v320 = vld [vmem:[%s1 + $0x1c] sm:$0xf]
      %v321 = vld [vmem:[%s1 + $0x20] sm:$0xf]
      %v322 = vld [vmem:[%s1 + $0x24] sm:$0xf]
      %v323 = vld [vmem:[%s1 + $0x28] sm:$0xf]
      %v324 = vld [vmem:[%s1 + $0x2c] sm:$0xf]
      %v325 = vld [vmem:[%s1 + $0x30] sm:$0xf]
      %v326 = vld [vmem:[%s1 + $0x34] sm:$0xf]
      %v327 = vld [vmem:[%s1 + $0x38] sm:$0xf]
      %v328 = vld [vmem:[%s1 + $0x3c] sm:$0xf]
      %v329 = vld [vmem:[%s2] sm:$0xff]
      %v330 = vld [vmem:[%s2 + $0x8] sm:$0xff]
      %v331 = vld [vmem:[%s2 + $0x10] sm:$0xff]
      %v332 = vld [vmem:[%s2 + $0x18] sm:$0xff]
      %v333 = vld [vmem:[%s2 + $0x20] sm:$0xff]
      %v334 = vld [vmem:[%s2 + $0x28] sm:$0xff]
      %v335 = vld [vmem:[%s2 + $0x30] sm:$0xff]
      %v336 = vld [vmem:[%s2 + $0x38] sm:$0xff]
      %v337 = vld [vmem:[%s2 + $0x40] sm:$0xff]
      %v338 = vld [vmem:[%s2 + $0x48] sm:$0xff]
      %v339 = vld [vmem:[%s2 + $0x50] sm:$0xff]
      %v340 = vld [vmem:[%s2 + $0x58] sm:$0xff]
      %v341 = vld [vmem:[%s2 + $0x60] sm:$0xff]
      %v342 = vld [vmem:[%s2 + $0x68] sm:$0xff]
      %v343 = vld [vmem:[%s2 + $0x70] sm:$0xff]
      %v344 = vld [vmem:[%s2 + $0x78] sm:$0xff]
      %346 = vset.pattern.permute.xlu0 0
      %347 = vperm.xlu0 %346, %v329
      %v348 = vpop.permute.xlu0 %347
      %351 = vset.pattern.permute.xlu0 0
      %352 = vperm.xlu0 %351, %v330
      %v353 = vpop.permute.xlu0 %352
      %356 = vset.pattern.permute.xlu0 0
      %357 = vperm.xlu0 %356, %v331
      %v358 = vpop.permute.xlu0 %357
      %361 = vset.pattern.permute.xlu0 0
      %362 = vperm.xlu0 %361, %v332
      %v363 = vpop.permute.xlu0 %362
      %366 = vset.pattern.permute.xlu0 0
      %367 = vperm.xlu0 %366, %v333
      %v368 = vpop.permute.xlu0 %367
      %371 = vset.pattern.permute.xlu0 0
      %372 = vperm.xlu0 %371, %v334
      %v373 = vpop.permute.xlu0 %372
      %376 = vset.pattern.permute.xlu0 0
      %377 = vperm.xlu0 %376, %v335
      %v378 = vpop.permute.xlu0 %377
      %381 = vset.pattern.permute.xlu0 0
      %382 = vperm.xlu0 %381, %v336
      %v383 = vpop.permute.xlu0 %382
      %386 = vset.pattern.permute.xlu0 0
      %387 = vperm.xlu0 %386, %v337
      %v388 = vpop.permute.xlu0 %387
      %391 = vset.pattern.permute.xlu0 0
      %392 = vperm.xlu0 %391, %v338
      %v393 = vpop.permute.xlu0 %392
      %396 = vset.pattern.permute.xlu0 0
      %397 = vperm.xlu0 %396, %v339
      %v398 = vpop.permute.xlu0 %397
      %401 = vset.pattern.permute.xlu0 0
      %402 = vperm.xlu0 %401, %v340
      %v403 = vpop.permute.xlu0 %402
      %406 = vset.pattern.permute.xlu0 0
      %407 = vperm.xlu0 %406, %v341
      %v408 = vpop.permute.xlu0 %407
      %411 = vset.pattern.permute.xlu0 0
      %412 = vperm.xlu0 %411, %v342
      %v413 = vpop.permute.xlu0 %412
      %416 = vset.pattern.permute.xlu0 0
      %417 = vperm.xlu0 %416, %v343
      %v418 = vpop.permute.xlu0 %417
      %421 = vset.pattern.permute.xlu0 0
      %422 = vperm.xlu0 %421, %v344
      %v423 = vpop.permute.xlu0 %422
      %v441 = vunpack.c.l.b16 %v313
      %v442 = vunpack.c.l.b16 %v314
      %v443 = vunpack.c.l.b16 %v315
      %v444 = vunpack.c.l.b16 %v316
      %v445 = vunpack.c.l.b16 %v317
      %v446 = vunpack.c.l.b16 %v318
      %v447 = vunpack.c.l.b16 %v319
      %v448 = vunpack.c.l.b16 %v320
      %v449 = vunpack.c.l.b16 %v321
      %v450 = vunpack.c.l.b16 %v322
      %v451 = vunpack.c.l.b16 %v323
      %v452 = vunpack.c.l.b16 %v324
      %v453 = vunpack.c.l.b16 %v325
      %v454 = vunpack.c.l.b16 %v326
      %v455 = vunpack.c.l.b16 %v327
      %v456 = vunpack.c.l.b16 %v328
      %v457 = vpack.c.b16 %v442, %v441
      %v458 = vpack.c.b16 %v444, %v443
      %v459 = vpack.c.b16 %v446, %v445
      %v460 = vpack.c.b16 %v448, %v447
      %v461 = vpack.c.b16 %v450, %v449
      %v462 = vpack.c.b16 %v452, %v451
      %v463 = vpack.c.b16 %v454, %v453
      %v464 = vpack.c.b16 %v456, %v455
      %v467 = vunpack.c.l.b16 %v311
      %v468 = vunpack.c.l.b16 %v312
      %v469 = vpack.c.b16 %v468, %v467
      %vm471 = vcmask 130048
      %v473 = vsel %vm471, %v457, 0
      %v476 = vsel %vm471, %v458, 0
      %v479 = vsel %vm471, %v459, 0
      %v482 = vsel %vm471, %v460, 0
      %v485 = vsel %vm471, %v461, 0
      %v488 = vsel %vm471, %v462, 0
      %v491 = vsel %vm471, %v463, 0
      %v494 = vsel %vm471, %v464, 0
      %496 = vmatprep.subr.bf16.mxu0 0
      %497 = vmatpush1.bf16.msra.mxu0 %v469
      %498 = vmatprep.subr.bf16.mxu0 0
      %499 = vmatpush1.bf16.msra.mxu0 0
      %500 = vmatprep.subr.bf16.mxu0 0
      %501 = vmatpush1.bf16.msra.mxu0 0
      %502 = vmatprep.subr.bf16.mxu0 0
      %503 = vmatpush1.bf16.msra.mxu0 0
      %504 = vmatprep.subr.bf16.mxu0 0
      %505 = vmatpush1.bf16.msra.mxu0 0
      %506 = vmatprep.subr.bf16.mxu0 0
      %507 = vmatpush1.bf16.msra.mxu0 0
      %508 = vmatprep.subr.bf16.mxu0 0
      %509 = vmatpush1.bf16.msra.mxu0 0
      %510 = vmatprep.subr.bf16.mxu0 0
      %511 = vmatpush1.bf16.msra.mxu0 0
      %512 = vmatprep.subr.bf16.mxu0 0
      %513 = vmatpush1.bf16.msra.mxu0 0
      %514 = vmatprep.subr.bf16.mxu0 0
      %515 = vmatpush1.bf16.msra.mxu0 0
      %516 = vmatprep.subr.bf16.mxu0 0
      %517 = vmatpush1.bf16.msra.mxu0 0
      %518 = vmatprep.subr.bf16.mxu0 0
      %519 = vmatpush1.bf16.msra.mxu0 0
      %520 = vmatprep.subr.bf16.mxu0 0
      %521 = vmatpush1.bf16.msra.mxu0 0
      %522 = vmatprep.subr.bf16.mxu0 0
      %523 = vmatpush1.bf16.msra.mxu0 0
      %524 = vmatprep.subr.bf16.mxu0 0
      %525 = vmatpush1.bf16.msra.mxu0 0
      %526 = vmatprep.subr.bf16.mxu0 0
      %527 = vmatpush1.bf16.msra.mxu0 0
      %528 = vmatprep.mubr.bf16.mxu0 0
      %529 = vmatmul.mubr.bf16.gmra.mrb[0].mxu0 %v473
      %v530 = vpop.f32.mrb[0].mxu0
      %v531 = vadd.f32 %v348, %v530
      %v532 = vpop.f32.mrb[0].mxu0
      %v533 = vpop.f32.mrb[0].mxu0
      %v534 = vadd.f32 %v353, %v533
      %v535 = vpop.f32.mrb[0].mxu0
      %536 = vmatprep.mubr.bf16.mxu0 0
      %537 = vmatmul.mubr.bf16.gmra.mrb[0].mxu0 %v476
      %v538 = vpop.f32.mrb[0].mxu0
      %v539 = vadd.f32 %v358, %v538
      %v540 = vpop.f32.mrb[0].mxu0
      %v541 = vpop.f32.mrb[0].mxu0
      %v542 = vadd.f32 %v363, %v541
      %v543 = vpop.f32.mrb[0].mxu0
      %544 = vmatprep.mubr.bf16.mxu0 0
      %545 = vmatmul.mubr.bf16.gmra.mrb[0].mxu0 %v479
      %v546 = vpop.f32.mrb[0].mxu0
      %v547 = vadd.f32 %v368, %v546
      %v548 = vpop.f32.mrb[0].mxu0
      %v549 = vpop.f32.mrb[0].mxu0
      %v550 = vadd.f32 %v373, %v549
      %v551 = vpop.f32.mrb[0].mxu0
      %552 = vmatprep.mubr.bf16.mxu0 0
      %553 = vmatmul.mubr.bf16.gmra.mrb[0].mxu0 %v482
      %v554 = vpop.f32.mrb[0].mxu0
      %v555 = vadd.f32 %v378, %v554
      %v556 = vpop.f32.mrb[0].mxu0
      %v557 = vpop.f32.mrb[0].mxu0
      %v558 = vadd.f32 %v383, %v557
      %v559 = vpop.f32.mrb[0].mxu0
      %560 = vmatprep.mubr.bf16.mxu0 0
      %561 = vmatmul.mubr.bf16.gmra.mrb[0].mxu0 %v485
      %v562 = vpop.f32.mrb[0].mxu0
      %v563 = vadd.f32 %v388, %v562
      %v564 = vpop.f32.mrb[0].mxu0
      %v565 = vpop.f32.mrb[0].mxu0
      %v566 = vadd.f32 %v393, %v565
      %v567 = vpop.f32.mrb[0].mxu0
      %568 = vmatprep.mubr.bf16.mxu0 0
      %569 = vmatmul.mubr.bf16.gmra.mrb[0].mxu0 %v488
      %v570 = vpop.f32.mrb[0].mxu0
      %v571 = vadd.f32 %v398, %v570
      %v572 = vpop.f32.mrb[0].mxu0
      %v573 = vpop.f32.mrb[0].mxu0
      %v574 = vadd.f32 %v403, %v573
      %v575 = vpop.f32.mrb[0].mxu0
      %576 = vmatprep.mubr.bf16.mxu0 0
      %577 = vmatmul.mubr.bf16.gmra.mrb[0].mxu0 %v491
      %v578 = vpop.f32.mrb[0].mxu0
      %v579 = vadd.f32 %v408, %v578
      %v580 = vpop.f32.mrb[0].mxu0
      %v581 = vpop.f32.mrb[0].mxu0
      %v582 = vadd.f32 %v413, %v581
      %v583 = vpop.f32.mrb[0].mxu0
      %584 = vmatprep.mubr.bf16.mxu0 0
      %585 = vmatmul.mubr.bf16.gmra.mrb[0].mxu0 %v494
      %v586 = vpop.f32.mrb[0].mxu0
      %v587 = vadd.f32 %v418, %v586
      %v588 = vpop.f32.mrb[0].mxu0
      %v589 = vpop.f32.mrb[0].mxu0
      %v590 = vadd.f32 %v423, %v589
      %v591 = vpop.f32.mrb[0].mxu0
      %592 = vdwg.mxu0
      %vm593 = vcmp.gt.f32.partialorder %v531, 0.0
      %vm594 = vcmp.gt.f32.partialorder %v534, 0.0
      %vm595 = vcmp.gt.f32.partialorder %v539, 0.0
      %vm596 = vcmp.gt.f32.partialorder %v542, 0.0
      %vm597 = vcmp.gt.f32.partialorder %v547, 0.0
      %vm598 = vcmp.gt.f32.partialorder %v550, 0.0
      %vm599 = vcmp.gt.f32.partialorder %v555, 0.0
      %vm600 = vcmp.gt.f32.partialorder %v558, 0.0
      %vm601 = vcmp.gt.f32.partialorder %v563, 0.0
      %vm602 = vcmp.gt.f32.partialorder %v566, 0.0
      %vm603 = vcmp.gt.f32.partialorder %v571, 0.0
      %vm604 = vcmp.gt.f32.partialorder %v574, 0.0
      %vm605 = vcmp.gt.f32.partialorder %v579, 0.0
      %vm606 = vcmp.gt.f32.partialorder %v582, 0.0
      %vm607 = vcmp.gt.f32.partialorder %v587, 0.0
      %vm608 = vcmp.gt.f32.partialorder %v590, 0.0
      %v609 = vmul.f32 %v531, 0.01
      %v610 = vmul.f32 %v534, 0.01
      %v611 = vmul.f32 %v539, 0.01
      %v612 = vmul.f32 %v542, 0.01
      %v613 = vmul.f32 %v547, 0.01
      %v614 = vmul.f32 %v550, 0.01
      %v615 = vmul.f32 %v555, 0.01
      %v616 = vmul.f32 %v558, 0.01
      %v617 = vmul.f32 %v563, 0.01
      %v618 = vmul.f32 %v566, 0.01
      %v619 = vmul.f32 %v571, 0.01
      %v620 = vmul.f32 %v574, 0.01
      %v621 = vmul.f32 %v579, 0.01
      %v622 = vmul.f32 %v582, 0.01
      %v623 = vmul.f32 %v587, 0.01
      %v624 = vmul.f32 %v590, 0.01
      %v625 = vsel %vm593, %v531, %v609
      %v626 = vsel %vm594, %v534, %v610
      %v627 = vsel %vm595, %v539, %v611
      %v628 = vsel %vm596, %v542, %v612
      %v629 = vsel %vm597, %v547, %v613
      %v630 = vsel %vm598, %v550, %v614
      %v631 = vsel %vm599, %v555, %v615
      %v632 = vsel %vm600, %v558, %v616
      %v633 = vsel %vm601, %v563, %v617
      %v634 = vsel %vm602, %v566, %v618
      %v635 = vsel %vm603, %v571, %v619
      %v636 = vsel %vm604, %v574, %v620
      %v637 = vsel %vm605, %v579, %v621
      %v638 = vsel %vm606, %v582, %v622
      %v639 = vsel %vm607, %v587, %v623
      %v640 = vsel %vm608, %v590, %v624
      %v641 = vld [vmem:[%s3] sm:$0xf]
      %v642 = vld [vmem:[%s3 + $0x4] sm:$0xf]
      %v643 = vld [vmem:[%s3 + $0x8] sm:$0xf]
      %v644 = vld [vmem:[%s3 + $0xc] sm:$0xf]
      %v645 = vld [vmem:[%s3 + $0x10] sm:$0xf]
      %v646 = vld [vmem:[%s3 + $0x14] sm:$0xf]
      %v647 = vld [vmem:[%s3 + $0x18] sm:$0xf]
      %v648 = vld [vmem:[%s3 + $0x1c] sm:$0xf]
      %v649 = vld [vmem:[%s3 + $0x20] sm:$0x1]
      %v650 = vpack.c.bf16 %v626, %v625
      %v651 = vpack.c.bf16 %v628, %v627
      %v652 = vpack.c.bf16 %v630, %v629
      %v653 = vpack.c.bf16 %v632, %v631
      %v654 = vpack.c.bf16 %v634, %v633
      %v655 = vpack.c.bf16 %v636, %v635
      %v656 = vpack.c.bf16 %v638, %v637
      %v657 = vpack.c.bf16 %v640, %v639
      %v658 = vld [vmem:[%s4] sm:$0xff]
      %v659 = vld [vmem:[%s4 + $0x8] sm:$0xff]
      %v660 = vld [vmem:[%s4 + $0x10] sm:$0xff]
      %v661 = vld [vmem:[%s4 + $0x18] sm:$0xff]
      %v662 = vld [vmem:[%s4 + $0x20] sm:$0xff]
      %v663 = vld [vmem:[%s4 + $0x28] sm:$0xff]
      %v664 = vld [vmem:[%s4 + $0x30] sm:$0xff]
      %v665 = vld [vmem:[%s4 + $0x38] sm:$0xff]
      %v666 = vld [vmem:[%s4 + $0x40] sm:$0x1]
      %668 = vset.pattern.permute.xlu0 0
      %669 = vperm.xlu0 %668, %v658
      %v670 = vpop.permute.xlu0 %669
      %673 = vset.pattern.permute.xlu0 0
      %674 = vperm.xlu0 %673, %v659
      %v675 = vpop.permute.xlu0 %674
      %678 = vset.pattern.permute.xlu0 0
      %679 = vperm.xlu0 %678, %v660
      %v680 = vpop.permute.xlu0 %679
      %683 = vset.pattern.permute.xlu0 0
      %684 = vperm.xlu0 %683, %v661
      %v685 = vpop.permute.xlu0 %684
      %688 = vset.pattern.permute.xlu0 0
      %689 = vperm.xlu0 %688, %v662
      %v690 = vpop.permute.xlu0 %689
      %693 = vset.pattern.permute.xlu0 0
      %694 = vperm.xlu0 %693, %v663
      %v695 = vpop.permute.xlu0 %694
      %698 = vset.pattern.permute.xlu0 0
      %699 = vperm.xlu0 %698, %v664
      %v700 = vpop.permute.xlu0 %699
      %703 = vset.pattern.permute.xlu0 0
      %704 = vperm.xlu0 %703, %v665
      %v705 = vpop.permute.xlu0 %704
      %708 = vset.pattern.permute.xlu0 0
      %709 = vperm.xlu0 %708, %v666
      %v710 = vpop.permute.xlu0 %709
      %v721 = vunpack.c.l.b16 %v641
      %v722 = vunpack.c.l.b16 %v642
      %v723 = vunpack.c.l.b16 %v643
      %v724 = vunpack.c.l.b16 %v644
      %v725 = vunpack.c.l.b16 %v645
      %v726 = vunpack.c.l.b16 %v646
      %v727 = vunpack.c.l.b16 %v647
      %v728 = vunpack.c.l.b16 %v648
      %v729 = vunpack.c.l.b16 %v649
      %v730 = vpack.c.b16 %v722, %v721
      %v731 = vpack.c.b16 %v724, %v723
      %v732 = vpack.c.b16 %v726, %v725
      %v733 = vpack.c.b16 %v728, %v727
      %v734 = vpack.c.b16 %v729, %v729
      %740 = vmatprep.subr.bf16.mxu0 0
      %741 = vmatpush1.bf16.msra.mxu0 %v650
      %742 = vmatprep.subr.bf16.mxu0 0
      %743 = vmatpush1.bf16.msra.mxu0 %v651
      %744 = vmatprep.subr.bf16.mxu0 0
      %745 = vmatpush1.bf16.msra.mxu0 %v652
      %746 = vmatprep.subr.bf16.mxu0 0
      %747 = vmatpush1.bf16.msra.mxu0 %v653
      %748 = vmatprep.subr.bf16.mxu0 0
      %749 = vmatpush1.bf16.msra.mxu0 %v654
      %750 = vmatprep.subr.bf16.mxu0 0
      %751 = vmatpush1.bf16.msra.mxu0 %v655
      %752 = vmatprep.subr.bf16.mxu0 0
      %753 = vmatpush1.bf16.msra.mxu0 %v656
      %754 = vmatprep.subr.bf16.mxu0 0
      %755 = vmatpush1.bf16.msra.mxu0 %v657
      %756 = vmatprep.subr.bf16.mxu0 0
      %757 = vmatpush1.bf16.msra.mxu0 0
      %758 = vmatprep.subr.bf16.mxu0 0
      %759 = vmatpush1.bf16.msra.mxu0 0
      %760 = vmatprep.subr.bf16.mxu0 0
      %761 = vmatpush1.bf16.msra.mxu0 0
      %762 = vmatprep.subr.bf16.mxu0 0
      %763 = vmatpush1.bf16.msra.mxu0 0
      %764 = vmatprep.subr.bf16.mxu0 0
      %765 = vmatpush1.bf16.msra.mxu0 0
      %766 = vmatprep.subr.bf16.mxu0 0
      %767 = vmatpush1.bf16.msra.mxu0 0
      %768 = vmatprep.subr.bf16.mxu0 0
      %769 = vmatpush1.bf16.msra.mxu0 0
      %770 = vmatprep.subr.bf16.mxu0 0
      %771 = vmatpush1.bf16.msra.mxu0 0
      %772 = vmatprep.mubr.bf16.mxu0 0
      %773 = vmatmul.mubr.bf16.gmra.mrb[0].mxu0 %v730
      %v774 = vpop.f32.mrb[0].mxu0
      %v775 = vadd.f32 %v670, %v774
      %v776 = vpop.f32.mrb[0].mxu0
      %v777 = vpop.f32.mrb[0].mxu0
      %v778 = vadd.f32 %v675, %v777
      %v779 = vpop.f32.mrb[0].mxu0
      %780 = vmatprep.mubr.bf16.mxu0 0
      %781 = vmatmul.mubr.bf16.gmra.mrb[0].mxu0 %v731
      %v782 = vpop.f32.mrb[0].mxu0
      %v783 = vadd.f32 %v680, %v782
      %v784 = vpop.f32.mrb[0].mxu0
      %v785 = vpop.f32.mrb[0].mxu0
      %v786 = vadd.f32 %v685, %v785
      %v787 = vpop.f32.mrb[0].mxu0
      %788 = vmatprep.mubr.bf16.mxu0 0
      %789 = vmatmul.mubr.bf16.gmra.mrb[0].mxu0 %v732
      %v790 = vpop.f32.mrb[0].mxu0
      %v791 = vadd.f32 %v690, %v790
      %v792 = vpop.f32.mrb[0].mxu0
      %v793 = vpop.f32.mrb[0].mxu0
      %v794 = vadd.f32 %v695, %v793
      %v795 = vpop.f32.mrb[0].mxu0
      %796 = vmatprep.mubr.bf16.mxu0 0
      %797 = vmatmul.mubr.bf16.gmra.mrb[0].mxu0 %v733
      %v798 = vpop.f32.mrb[0].mxu0
      %v799 = vadd.f32 %v700, %v798
      %v800 = vpop.f32.mrb[0].mxu0
      %v801 = vpop.f32.mrb[0].mxu0
      %v802 = vadd.f32 %v705, %v801
      %v803 = vpop.f32.mrb[0].mxu0
      %804 = vmatprep.mubr.bf16.mxu0 0
      %805 = vmatmul.mubr.bf16.gmra.mrb[0].mxu0 %v734
      %v806 = vpop.f32.mrb[0].mxu0
      %v807 = vadd.f32 %v710, %v806
      %v808 = vpop.f32.mrb[0].mxu0
      %v809 = vpop.f32.mrb[0].mxu0
      %v810 = vpop.f32.mrb[0].mxu0
      %811 = vdwg.mxu0
      %v812 = vxor.u32 %v775, 2147483648
      %v813 = vxor.u32 %v778, 2147483648
      %v814 = vxor.u32 %v783, 2147483648
      %v815 = vxor.u32 %v786, 2147483648
      %v816 = vxor.u32 %v791, 2147483648
      %v817 = vxor.u32 %v794, 2147483648
      %v818 = vxor.u32 %v799, 2147483648
      %v819 = vxor.u32 %v802, 2147483648
      %v820 = vxor.u32 %v807, 2147483648
      %v821 = vmul.f32 %v812, 1.442695
      %v822 = vpow.pop %v821
      %v823 = vmul.f32 %v813, 1.442695
      %v824 = vpow.pop %v823
      %v825 = vmul.f32 %v814, 1.442695
      %v826 = vpow.pop %v825
      %v827 = vmul.f32 %v815, 1.442695
      %v828 = vpow.pop %v827
      %v829 = vmul.f32 %v816, 1.442695
      %v830 = vpow.pop %v829
      %v831 = vmul.f32 %v817, 1.442695
      %v832 = vpow.pop %v831
      %v833 = vmul.f32 %v818, 1.442695
      %v834 = vpow.pop %v833
      %v835 = vmul.f32 %v819, 1.442695
      %v836 = vpow.pop %v835
      %v837 = vmul.f32 %v820, 1.442695
      %v838 = vpow.pop %v837
      %v839 = vadd.f32 %v822, 1.0
      %v840 = vadd.f32 %v824, 1.0
      %v841 = vadd.f32 %v826, 1.0
      %v842 = vadd.f32 %v828, 1.0
      %v843 = vadd.f32 %v830, 1.0
      %v844 = vadd.f32 %v832, 1.0
      %v845 = vadd.f32 %v834, 1.0
      %v846 = vadd.f32 %v836, 1.0
      %v847 = vadd.f32 %v838, 1.0
      %v848 = vrcp.pop %v839
      %v849 = vmul.f32 1.0, %v848
      %v850 = vrcp.pop %v840
      %v851 = vmul.f32 1.0, %v850
      %v852 = vrcp.pop %v841
      %v853 = vmul.f32 1.0, %v852
      %v854 = vrcp.pop %v842
      %v855 = vmul.f32 1.0, %v854
      %v856 = vrcp.pop %v843
      %v857 = vmul.f32 1.0, %v856
      %v858 = vrcp.pop %v844
      %v859 = vmul.f32 1.0, %v858
      %v860 = vrcp.pop %v845
      %v861 = vmul.f32 1.0, %v860
      %v862 = vrcp.pop %v846
      %v863 = vmul.f32 1.0, %v862
      %v864 = vrcp.pop %v847
      %v865 = vmul.f32 1.0, %v864
      %v866 = vld [vmem:[%s5] sm:$0xff]
      %v867 = vld [vmem:[%s5 + $0x8] sm:$0xff]
      %v868 = vld [vmem:[%s5 + $0x10] sm:$0xff]
      %v869 = vld [vmem:[%s5 + $0x18] sm:$0xff]
      %v870 = vld [vmem:[%s5 + $0x20] sm:$0xff]
      %v871 = vld [vmem:[%s5 + $0x28] sm:$0xff]
      %v872 = vld [vmem:[%s5 + $0x30] sm:$0xff]
      %v873 = vld [vmem:[%s5 + $0x38] sm:$0xff]
      %v874 = vld [vmem:[%s5 + $0x40] sm:$0x1]
      %v875 = vld [vmem:[%s6] sm:$0xff]
      %v876 = vld [vmem:[%s6 + $0x8] sm:$0xff]
      %v877 = vld [vmem:[%s6 + $0x10] sm:$0xff]
      %v878 = vld [vmem:[%s6 + $0x18] sm:$0xff]
      %v879 = vld [vmem:[%s6 + $0x20] sm:$0xff]
      %v880 = vld [vmem:[%s6 + $0x28] sm:$0xff]
      %v881 = vld [vmem:[%s6 + $0x30] sm:$0xff]
      %v882 = vld [vmem:[%s6 + $0x38] sm:$0xff]
      %v883 = vld [vmem:[%s6 + $0x40] sm:$0x1]
      %885 = vset.pattern.permute.xlu0 0
      %886 = vperm.xlu0 %885, %v875
      %v887 = vpop.permute.xlu0 %886
      %890 = vset.pattern.permute.xlu0 0
      %891 = vperm.xlu0 %890, %v876
      %v892 = vpop.permute.xlu0 %891
      %895 = vset.pattern.permute.xlu0 0
      %896 = vperm.xlu0 %895, %v877
      %v897 = vpop.permute.xlu0 %896
      %900 = vset.pattern.permute.xlu0 0
      %901 = vperm.xlu0 %900, %v878
      %v902 = vpop.permute.xlu0 %901
      %905 = vset.pattern.permute.xlu0 0
      %906 = vperm.xlu0 %905, %v879
      %v907 = vpop.permute.xlu0 %906
      %910 = vset.pattern.permute.xlu0 0
      %911 = vperm.xlu0 %910, %v880
      %v912 = vpop.permute.xlu0 %911
      %915 = vset.pattern.permute.xlu0 0
      %916 = vperm.xlu0 %915, %v881
      %v917 = vpop.permute.xlu0 %916
      %920 = vset.pattern.permute.xlu0 0
      %921 = vperm.xlu0 %920, %v882
      %v922 = vpop.permute.xlu0 %921
      %925 = vset.pattern.permute.xlu0 0
      %926 = vperm.xlu0 %925, %v883
      %v927 = vpop.permute.xlu0 %926
      %v929 = vadd.f32 %v849, %v887
      %v930 = vadd.f32 %v851, %v892
      %v931 = vadd.f32 %v853, %v897
      %v932 = vadd.f32 %v855, %v902
      %v933 = vadd.f32 %v857, %v907
      %v934 = vadd.f32 %v859, %v912
      %v935 = vadd.f32 %v861, %v917
      %v936 = vadd.f32 %v863, %v922
      %v937 = vadd.f32 %v865, %v927
      %v938 = vsub.f32 %v929, %v775
      %v939 = vsub.f32 %v930, %v778
      %v940 = vsub.f32 %v931, %v783
      %v941 = vsub.f32 %v932, %v786
      %v942 = vsub.f32 %v933, %v791
      %v943 = vsub.f32 %v934, %v794
      %v944 = vsub.f32 %v935, %v799
      %v945 = vsub.f32 %v936, %v802
      %v946 = vsub.f32 %v937, %v807
      %948 = vset.pattern.permute.xlu0 0
      %949 = vperm.xlu0 %948, %v866
      %v950 = vpop.permute.xlu0 %949
      %953 = vset.pattern.permute.xlu0 0
      %954 = vperm.xlu0 %953, %v867
      %v955 = vpop.permute.xlu0 %954
      %958 = vset.pattern.permute.xlu0 0
      %959 = vperm.xlu0 %958, %v868
      %v960 = vpop.permute.xlu0 %959
      %963 = vset.pattern.permute.xlu0 0
      %964 = vperm.xlu0 %963, %v869
      %v965 = vpop.permute.xlu0 %964
      %968 = vset.pattern.permute.xlu0 0
      %969 = vperm.xlu0 %968, %v870
      %v970 = vpop.permute.xlu0 %969
      %973 = vset.pattern.permute.xlu0 0
      %974 = vperm.xlu0 %973, %v871
      %v975 = vpop.permute.xlu0 %974
      %978 = vset.pattern.permute.xlu0 0
      %979 = vperm.xlu0 %978, %v872
      %v980 = vpop.permute.xlu0 %979
      %983 = vset.pattern.permute.xlu0 0
      %984 = vperm.xlu0 %983, %v873
      %v985 = vpop.permute.xlu0 %984
      %988 = vset.pattern.permute.xlu0 0
      %989 = vperm.xlu0 %988, %v874
      %v990 = vpop.permute.xlu0 %989
      %v992 = vmul.f32 %v950, %v938
      %v993 = vmul.f32 %v955, %v939
      %v994 = vmul.f32 %v960, %v940
      %v995 = vmul.f32 %v965, %v941
      %v996 = vmul.f32 %v970, %v942
      %v997 = vmul.f32 %v975, %v943
      %v998 = vmul.f32 %v980, %v944
      %v999 = vmul.f32 %v985, %v945
      %v1000 = vmul.f32 %v990, %v946
      %v1001 = vadd.f32 %v775, %v992
      %v1002 = vadd.f32 %v778, %v993
      %v1003 = vadd.f32 %v783, %v994
      %v1004 = vadd.f32 %v786, %v995
      %v1005 = vadd.f32 %v791, %v996
      %v1006 = vadd.f32 %v794, %v997
      %v1007 = vadd.f32 %v799, %v998
      %v1008 = vadd.f32 %v802, %v999
      %v1009 = vadd.f32 %v807, %v1000
      %vm1010 = vcmask 400384
      %1011 = vst.msk [vmem:[%s309] sm:$0xff] %vm1010, %v1001
      %1012 = vst.msk [vmem:[%s309 + $0x8] sm:$0xff] %vm1010, %v1002
      %1013 = vst.msk [vmem:[%s309 + $0x10] sm:$0xff] %vm1010, %v1003
      %1014 = vst.msk [vmem:[%s309 + $0x18] sm:$0xff] %vm1010, %v1004
      %1015 = vst.msk [vmem:[%s309 + $0x20] sm:$0xff] %vm1010, %v1005
      %1016 = vst.msk [vmem:[%s309 + $0x28] sm:$0xff] %vm1010, %v1006
      %1017 = vst.msk [vmem:[%s309 + $0x30] sm:$0xff] %vm1010, %v1007
      %1018 = vst.msk [vmem:[%s309 + $0x38] sm:$0xff] %vm1010, %v1008
      %vm1019 = vcmask 393216
      %1020 = vst.msk [vmem:[%s309 + $0x40] sm:$0x1] %vm1019, %v1009
      %p1021 = scmp.lt.s32.totalorder %s22, 1
      %s1022 = scalar_select %p1021, %s22, 1
      %p1023 = scmp.lt.s32.totalorder %s23, 0
      %s1024 = scalar_select %p1023, %s23, 0
      %s1025 = smul.addr %s1022, 9
      %s1026 = sadd.s32 %s1024, %s1025
      %s1027 = smul.addr %s1026, 8
      %s1028 = scalar_lea.vmem %s7, %s1027
      // Predicated region
      $region49: #{tpu_custom_call.1} parent=47 // pred_check
        %p1029 = pneg %p204
      $region50: #{tpu_custom_call.1} parent=47 // pred_check_branch
        %1031 = sbr.rel (%p1029) target = $region52
      $region51: #{tpu_custom_call.1} parent=47 // pred_region
        _
      $region52: #{tpu_custom_call.1} parent=47 // pred_fallthru
        _
    $region48: #{tpu_custom_call.1} parent=5 // pred_fallthru
      _
    %p1032 = scmp.le.s32.totalorder 2, %s13
    // Predicated region
    $region53: #{tpu_custom_call.1} parent=5 // pred_check
      %p1033 = pneg %p1032
    $region54: #{tpu_custom_call.1} parent=5 // pred_check_branch
      %1035 = sbr.rel (%p1033) target = $region56
    $region55: #{tpu_custom_call.1} parent=5 // pred_region
      %s1036 = ssub.s32 %s13, 2
      // Predicated region
      $region57: #{tpu_custom_call.1} parent=55 // pred_check
        %p1037 = pneg %p210
      $region58: #{tpu_custom_call.1} parent=55 // pred_check_branch
        %1039 = sbr.rel (%p1037) target = $region60
      $region59: #{tpu_custom_call.1} parent=55 // pred_region
        %p1040 = scmp.lt.s32.totalorder %s24, 1
        %s1041 = scalar_select %p1040, %s24, 1
        %p1042 = scmp.lt.s32.totalorder %s25, 0
        %s1043 = scalar_select %p1042, %s25, 0
        %s1044 = smul.addr %s1041, 9
        %s1045 = sadd.s32 %s1043, %s1044
        %s1046 = smul.addr %s1045, 8
        %s1047 = scalar_lea.vmem %s7, %s1046
      $region60: #{tpu_custom_call.1} parent=55 // pred_fallthru
        _
    $region56: #{tpu_custom_call.1} parent=5 // pred_fallthru
      _
  $region6: #{tpu_custom_call.1} parent=0 // loop_footer
    %s17 = sadd.s32 1, %s13
  $region7: #{tpu_custom_call.1} parent=0 // loop_footer_branch
    %12 = sbr.rel target = $region3
  $region8: #{tpu_custom_call.1} parent=0 // loop_exit
    _

</llo_original>
